<compile_context>
chip_gen: v6e
topology: v6e:2x2x1
jax: 0.10.0
libtpu: 0.0.40
codegen_flags: <defaults>
</compile_context>

<pallas_src>
import functools

import jax
import jax.numpy as jnp
from jax import lax
from jax.experimental import pallas as pl
from jax.experimental.pallas import tpu as pltpu

H = W = 28                # spatial size implied by fc = Linear(1*28*28, 10)
HW = H * W                # 784
K = 3                     # conv kernel size
NUM_CLASSES = 10
N_PAD = 128               # lane-dense logits width (>= NUM_CLASSES, multiple of 128)
PAD = 128                 # lane margin around the flattened image inside the VMEM scratch


def _round_up(n, m):
    return ((n + m - 1) // m) * m


def fused_cnn_kernel(x_ref, w_ref, fcw_ref, border_ref, o_ref, xp_ref):
    """One batch tile of conv3x3(pad=1) + flatten + fc, entirely in VMEM.

    x_ref:      (TB, 784)        f32  flattened input images
    w_ref:      (3, 3)           f32  conv weight (SMEM scalars)
    fcw_ref:    (128, 784)       f32  fc weight, rows 10..127 are zero (lane-dense logits)
    border_ref: (2, 784)         f32  column-boundary masks (left-tap valid, right-tap valid)
    o_ref:      (TB, 128)        f32  logits slab (cols 10..127 are zero)
    xp_ref:     (TB, 128+784+128) f32 scratch: zero margins + image interior (in-kernel padding)
    """
    tb = x_ref.shape[0]

    # ---- in-kernel zero padding: zero the slab, drop the tile in the middle ----
    xp_ref[...] = jnp.zeros_like(xp_ref)
    xp_ref[:, PAD:PAD + HW] = x_ref[...]

    # ---- 3x3 conv as 9 shifted multiply-accumulates on the flat slab ----
    # Taps are grouped by dw so each column-boundary mask is applied once per group.
    groups = []
    for dw in range(K):
        g = jnp.zeros((tb, HW), jnp.float32)
        for dh in range(K):
            off = (dh - 1) * W + (dw - 1)                     # flat shift of this tap
            g = g + w_ref[dh, dw] * xp_ref[:, PAD + off:PAD + off + HW]
        groups.append(g)
    conv_flat = (groups[0] * border_ref[0:1, :]               # dw=0 taps invalid at column 0
                 + groups[1]
                 + groups[2] * border_ref[1:2, :])            # dw=2 taps invalid at column 27

    # ---- fc on the MXU: (TB, 784) contracted against (128, 784) over dim 1 of both ----
    o_ref[...] = lax.dot_general(
        conv_flat, fcw_ref[...],
        dimension_numbers=(((1,), (1,)), ((), ())),
        preferred_element_type=jnp.float32)


@functools.partial(jax.jit, static_argnames=("tb",))
def quantized_cnn_forward(x, conv_w, fc_w, *, tb=256):
    """x: (B, 1, 28, 28) f32; conv_w: (1, 1, 3, 3) OIHW; fc_w: (10, 784) PyTorch Linear layout.

    tb: batch tile. 256 keeps per-step VMEM around ~5 MiB (safe for v7x's 64 MiB physical /
    32 MiB scoped VMEM and matches the 256-high MXU); on v6e/v5e it can be raised to 1024+
    together with vmem_limit_bytes to amortize per-grid-step overhead.
    """
    B = x.shape[0]

    # QuantStub: identity (fp32, model not converted)
    x_flat = x.reshape(B, HW)                                  # free contiguous reshape

    # Batch tiling: tile must be a multiple of 8 sublanes; pad ragged/tiny batches.
    TB = min(tb, _round_up(B, 8))
    Bp = _round_up(B, TB)
    if Bp != B:
        x_flat = jnp.pad(x_flat, ((0, Bp - B), (0, 0)))

    # Small, weight-only packing (would be hoisted / pre-packed once in a real deployment):
    w33 = conv_w[0, 0]                                                    # (3, 3) conv taps
    fcw = jnp.pad(fc_w, ((0, N_PAD - NUM_CLASSES), (0, 0)))               # (128, 784)
    col = jnp.arange(HW, dtype=jnp.int32) % W
    border = jnp.stack([(col != 0), (col != W - 1)]).astype(jnp.float32)  # (2, 784)

    grid = (Bp // TB,)
    logits_pad = pl.pallas_call(
        fused_cnn_kernel,
        out_shape=jax.ShapeDtypeStruct((Bp, N_PAD), jnp.float32),
        grid=grid,
        in_specs=[
            pl.BlockSpec((TB, HW), lambda i: (i, 0)),                     # x tile (pipelined)
            pl.BlockSpec((K, K), lambda i: (0, 0),
                         memory_space=pltpu.MemorySpace.SMEM),            # conv weight scalars
            pl.BlockSpec((N_PAD, HW), lambda i: (0, 0)),                  # fc weight (resident)
            pl.BlockSpec((2, HW), lambda i: (0, 0)),                      # border masks (resident)
        ],
        out_specs=pl.BlockSpec((TB, N_PAD), lambda i: (i, 0)),            # lane-dense logits slab
        scratch_shapes=[pltpu.VMEM((TB, PAD + HW + PAD), jnp.float32)],
        compiler_params=pltpu.CompilerParams(
            dimension_semantics=("parallel",),
            vmem_limit_bytes=32 * 1024 * 1024,
        ),
    )(x_flat, w33, fcw, border)

    # DeQuantStub: identity; drop batch padding and the lane-dense logits padding.
    return logits_pad[:B, :NUM_CLASSES]


if __name__ == "__main__":
    key = jax.random.PRNGKey(0)
    k1, k2, k3 = jax.random.split(key, 3)

    B = 2
    x = jax.random.normal(k1, (B, 1, H, W), dtype=jnp.float32)
    conv_w = jax.random.normal(k2, (1, 1, K, K), dtype=jnp.float32) * (1.0 / 3.0)
    fc_w = jax.random.normal(k3, (NUM_CLASSES, HW), dtype=jnp.float32) * (1.0 / 28.0)

    out = quantized_cnn_forward(x, conv_w, fc_w)
    out = jax.block_until_ready(out)
    assert out.shape == (B, NUM_CLASSES), out.shape

    # Pure-JAX reference for correctness
    ref_conv = lax.conv_general_dilated(
        x, conv_w, window_strides=(1, 1), padding=((1, 1), (1, 1)),
        dimension_numbers=("NCHW", "OIHW", "NCHW"),
    )
    ref = ref_conv.reshape(B, -1) @ fc_w.T
    err = jnp.max(jnp.abs(out - ref))
    assert jnp.allclose(out, ref, atol=1e-3, rtol=1e-3), err

    print("KERNEL_OK")
</pallas_src>

<mosaic_0001>
module attributes {stable_mosaic.version = 11 : i64} {
  func.func @fused_cnn_kernel(%arg0: i32, %arg1: memref<8x784xf32, #tpu.memory_space<vmem>>, %arg2: memref<3x3xf32, #tpu.memory_space<smem>>, %arg3: memref<128x784xf32, #tpu.memory_space<vmem>>, %arg4: memref<2x784xf32, #tpu.memory_space<vmem>>, %arg5: memref<8x128xf32, #tpu.memory_space<vmem>>, %arg6: memref<8x1040xf32, #tpu.memory_space<vmem>>) attributes {dimension_semantics = [#tpu.dimension_semantics<parallel>], iteration_bounds = array<i64: 1>, scalar_prefetch = 0 : i64, scratch_operands = 1 : i64, tpu.core_type = #tpu.core_type<tc>, window_params = [{transform_indices = @transform_0, window_bounds = array<i64: 8, 784>}, {transform_indices = @transform_1, window_bounds = array<i64: 3, 3>}, {pipeline_mode = #tpu.pipeline_mode<synchronous>, transform_indices = @transform_2, window_bounds = array<i64: 128, 784>}, {pipeline_mode = #tpu.pipeline_mode<synchronous>, transform_indices = @transform_3, window_bounds = array<i64: 2, 784>}, {transform_indices = @transform_4, window_bounds = array<i64: 8, 128>}]} {
    %cst = arith.constant 0.000000e+00 : f32
    %0 = vector.broadcast %cst : f32 to vector<8x1040xf32>
    %c0 = arith.constant 0 : index
    %c0_0 = arith.constant 0 : index
    %1 = vector.load %arg6[%c0, %c0_0] : memref<8x1040xf32, #tpu.memory_space<vmem>>, vector<8x1040xf32>
    tpu.vector_store %arg6[%c0, %c0_0], %0 {strides = array<i32>} : memref<8x1040xf32, #tpu.memory_space<vmem>>, vector<8x1040xf32>,
    %c0_1 = arith.constant 0 : index
    %c0_2 = arith.constant 0 : index
    %2 = vector.load %arg1[%c0_1, %c0_2] : memref<8x784xf32, #tpu.memory_space<vmem>>, vector<8x784xf32>
    %c0_3 = arith.constant 0 : index
    %c128 = arith.constant 128 : index
    %3 = vector.load %arg6[%c0_3, %c128] : memref<8x1040xf32, #tpu.memory_space<vmem>>, vector<8x784xf32>
    tpu.vector_store %arg6[%c0_3, %c128], %2 {strides = array<i32>} : memref<8x1040xf32, #tpu.memory_space<vmem>>, vector<8x784xf32>,
    %cst_4 = arith.constant 0.000000e+00 : f32
    %4 = vector.broadcast %cst_4 : f32 to vector<8x784xf32>
    %c0_5 = arith.constant 0 : index
    %c0_6 = arith.constant 0 : index
    %5 = memref.load %arg2[%c0_5, %c0_6] : memref<3x3xf32, #tpu.memory_space<smem>>
    %c0_7 = arith.constant 0 : index
    %c99 = arith.constant 99 : index
    %6 = vector.load %arg6[%c0_7, %c99] : memref<8x1040xf32, #tpu.memory_space<vmem>>, vector<8x784xf32>
    %7 = vector.broadcast %5 : f32 to vector<8x784xf32>
    %8 = arith.mulf %7, %6 : vector<8x784xf32>
    %9 = arith.addf %4, %8 : vector<8x784xf32>
    %c1 = arith.constant 1 : index
    %c0_8 = arith.constant 0 : index
    %10 = memref.load %arg2[%c1, %c0_8] : memref<3x3xf32, #tpu.memory_space<smem>>
    %c0_9 = arith.constant 0 : index
    %c127 = arith.constant 127 : index
    %11 = vector.load %arg6[%c0_9, %c127] : memref<8x1040xf32, #tpu.memory_space<vmem>>, vector<8x784xf32>
    %12 = vector.broadcast %10 : f32 to vector<8x784xf32>
    %13 = arith.mulf %12, %11 : vector<8x784xf32>
    %14 = arith.addf %9, %13 : vector<8x784xf32>
    %c2 = arith.constant 2 : index
    %c0_10 = arith.constant 0 : index
    %15 = memref.load %arg2[%c2, %c0_10] : memref<3x3xf32, #tpu.memory_space<smem>>
    %c0_11 = arith.constant 0 : index
    %c155 = arith.constant 155 : index
    %16 = vector.load %arg6[%c0_11, %c155] : memref<8x1040xf32, #tpu.memory_space<vmem>>, vector<8x784xf32>
    %17 = vector.broadcast %15 : f32 to vector<8x784xf32>
    %18 = arith.mulf %17, %16 : vector<8x784xf32>
    %19 = arith.addf %14, %18 : vector<8x784xf32>
    %cst_12 = arith.constant 0.000000e+00 : f32
    %20 = vector.broadcast %cst_12 : f32 to vector<8x784xf32>
    %c0_13 = arith.constant 0 : index
    %c1_14 = arith.constant 1 : index
    %21 = memref.load %arg2[%c0_13, %c1_14] : memref<3x3xf32, #tpu.memory_space<smem>>
    %c0_15 = arith.constant 0 : index
    %c100 = arith.constant 100 : index
    %22 = vector.load %arg6[%c0_15, %c100] : memref<8x1040xf32, #tpu.memory_space<vmem>>, vector<8x784xf32>
    %23 = vector.broadcast %21 : f32 to vector<8x784xf32>
    %24 = arith.mulf %23, %22 : vector<8x784xf32>
    %25 = arith.addf %20, %24 : vector<8x784xf32>
    %c1_16 = arith.constant 1 : index
    %c1_17 = arith.constant 1 : index
    %26 = memref.load %arg2[%c1_16, %c1_17] : memref<3x3xf32, #tpu.memory_space<smem>>
    %c0_18 = arith.constant 0 : index
    %c128_19 = arith.constant 128 : index
    %27 = vector.load %arg6[%c0_18, %c128_19] : memref<8x1040xf32, #tpu.memory_space<vmem>>, vector<8x784xf32>
    %28 = vector.broadcast %26 : f32 to vector<8x784xf32>
    %29 = arith.mulf %28, %27 : vector<8x784xf32>
    %30 = arith.addf %25, %29 : vector<8x784xf32>
    %c2_20 = arith.constant 2 : index
    %c1_21 = arith.constant 1 : index
    %31 = memref.load %arg2[%c2_20, %c1_21] : memref<3x3xf32, #tpu.memory_space<smem>>
    %c0_22 = arith.constant 0 : index
    %c156 = arith.constant 156 : index
    %32 = vector.load %arg6[%c0_22, %c156] : memref<8x1040xf32, #tpu.memory_space<vmem>>, vector<8x784xf32>
    %33 = vector.broadcast %31 : f32 to vector<8x784xf32>
    %34 = arith.mulf %33, %32 : vector<8x784xf32>
    %35 = arith.addf %30, %34 : vector<8x784xf32>
    %cst_23 = arith.constant 0.000000e+00 : f32
    %36 = vector.broadcast %cst_23 : f32 to vector<8x784xf32>
    %c0_24 = arith.constant 0 : index
    %c2_25 = arith.constant 2 : index
    %37 = memref.load %arg2[%c0_24, %c2_25] : memref<3x3xf32, #tpu.memory_space<smem>>
    %c0_26 = arith.constant 0 : index
    %c101 = arith.constant 101 : index
    %38 = vector.load %arg6[%c0_26, %c101] : memref<8x1040xf32, #tpu.memory_space<vmem>>, vector<8x784xf32>
    %39 = vector.broadcast %37 : f32 to vector<8x784xf32>
    %40 = arith.mulf %39, %38 : vector<8x784xf32>
    %41 = arith.addf %36, %40 : vector<8x784xf32>
    %c1_27 = arith.constant 1 : index
    %c2_28 = arith.constant 2 : index
    %42 = memref.load %arg2[%c1_27, %c2_28] : memref<3x3xf32, #tpu.memory_space<smem>>
    %c0_29 = arith.constant 0 : index
    %c129 = arith.constant 129 : index
    %43 = vector.load %arg6[%c0_29, %c129] : memref<8x1040xf32, #tpu.memory_space<vmem>>, vector<8x784xf32>
    %44 = vector.broadcast %42 : f32 to vector<8x784xf32>
    %45 = arith.mulf %44, %43 : vector<8x784xf32>
    %46 = arith.addf %41, %45 : vector<8x784xf32>
    %c2_30 = arith.constant 2 : index
    %c2_31 = arith.constant 2 : index
    %47 = memref.load %arg2[%c2_30, %c2_31] : memref<3x3xf32, #tpu.memory_space<smem>>
    %c0_32 = arith.constant 0 : index
    %c157 = arith.constant 157 : index
    %48 = vector.load %arg6[%c0_32, %c157] : memref<8x1040xf32, #tpu.memory_space<vmem>>, vector<8x784xf32>
    %49 = vector.broadcast %47 : f32 to vector<8x784xf32>
    %50 = arith.mulf %49, %48 : vector<8x784xf32>
    %51 = arith.addf %46, %50 : vector<8x784xf32>
    %c0_33 = arith.constant 0 : index
    %c0_34 = arith.constant 0 : index
    %52 = vector.load %arg4[%c0_33, %c0_34] : memref<2x784xf32, #tpu.memory_space<vmem>>, vector<1x784xf32>
    %53 = vector.broadcast %52 : vector<1x784xf32> to vector<8x784xf32>
    %54 = arith.mulf %19, %53 : vector<8x784xf32>
    %55 = arith.addf %54, %35 : vector<8x784xf32>
    %c1_35 = arith.constant 1 : index
    %c0_36 = arith.constant 0 : index
    %56 = vector.load %arg4[%c1_35, %c0_36] : memref<2x784xf32, #tpu.memory_space<vmem>>, vector<1x784xf32>
    %57 = vector.broadcast %56 : vector<1x784xf32> to vector<8x784xf32>
    %58 = arith.mulf %51, %57 : vector<8x784xf32>
    %59 = arith.addf %55, %58 : vector<8x784xf32>
    %c0_37 = arith.constant 0 : index
    %c0_38 = arith.constant 0 : index
    %60 = vector.load %arg3[%c0_37, %c0_38] : memref<128x784xf32, #tpu.memory_space<vmem>>, vector<128x784xf32>
    %cst_39 = arith.constant dense<0.000000e+00> : vector<8x128xf32>
    %61 = tpu.matmul %59, %60, %cst_39 {dimension_numbers = #tpu.dot_dimension_numbers<[1], [1], [0], [0], [0, 0, 1, 0], [], []>} : vector<8x784xf32>, vector<128x784xf32>, vector<8x128xf32> -> vector<8x128xf32>
    %c0_40 = arith.constant 0 : index
    %c0_41 = arith.constant 0 : index
    %62 = vector.load %arg5[%c0_40, %c0_41] : memref<8x128xf32, #tpu.memory_space<vmem>>, vector<8x128xf32>
    tpu.vector_store %arg5[%c0_40, %c0_41], %61 {strides = array<i32>} : memref<8x128xf32, #tpu.memory_space<vmem>>, vector<8x128xf32>,
    return
  }
  func.func @transform_0(%arg0: i32) -> (i32, i32) {
    %c0_i32 = arith.constant 0 : i32
    %c0_i32_0 = arith.constant 0 : i32
    return %arg0, %c0_i32 : i32, i32
  }
  func.func @transform_1(%arg0: i32) -> (i32, i32) {
    %c0_i32 = arith.constant 0 : i32
    %c0_i32_0 = arith.constant 0 : i32
    %c0_i32_1 = arith.constant 0 : i32
    return %c0_i32, %c0_i32_0 : i32, i32
  }
  func.func @transform_2(%arg0: i32) -> (i32, i32) {
    %c0_i32 = arith.constant 0 : i32
    %c0_i32_0 = arith.constant 0 : i32
    %c0_i32_1 = arith.constant 0 : i32
    return %c0_i32, %c0_i32_0 : i32, i32
  }
  func.func @transform_3(%arg0: i32) -> (i32, i32) {
    %c0_i32 = arith.constant 0 : i32
    %c0_i32_0 = arith.constant 0 : i32
    %c0_i32_1 = arith.constant 0 : i32
    return %c0_i32, %c0_i32_0 : i32, i32
  }
  func.func @transform_4(%arg0: i32) -> (i32, i32) {
    %c0_i32 = arith.constant 0 : i32
    %c0_i32_0 = arith.constant 0 : i32
    return %arg0, %c0_i32 : i32, i32
  }
}

</mosaic_0001>

<llo_original>
// kernel: quantized_cnn_forward.1
$region0: #{quantized_cnn_forward.1}
  #allocation0 [shape = 'u32[]', space=smem, size = 0x4, offset = 0x4, fixed_abs, tag = 'smem constant byte address 0x4 - core index']
  #allocation1 [shape = 'u32[144,128]{1,0:T(1,128)}', space=vmem, size = 0x12000, scoped, tag = 'internal scratch']
  #allocation2 [shape = 'f32[8,1040]{1,0:T(8,128)}', space=vmem, size = 0x9000, scoped, tag = 'scratch operand']
  %s0 = inlined_call_operand.vmem [shape: f32[8,784], index: 0, kind: input, shape index: {}]
  %s1 = inlined_call_operand.vmem [shape: f32[3,3], index: 1, kind: input, shape index: {}]
  %s2 = inlined_call_operand.vmem [shape: f32[128,784], index: 2, kind: input, shape index: {}]
  %s3 = inlined_call_operand.vmem [shape: f32[2,784], index: 3, kind: input, shape index: {}]
  %s4 = inlined_call_operand.vmem [shape: f32[8,128], index: 4, kind: output, shape index: {}]
  %s5 = sld [smem:[#allocation0]]
  $region30: #{quantized_cnn_forward.1} parent=0
    _
  %s7 = ssub.s32 1, %s5
  %s8 = scalar_select 0, %s7, %s5
  $region1: #{quantized_cnn_forward.1} parent=0
    #allocation3 [shape = 'u8[2048]{0}', space=smem, size = 0x800, scoped, tag = 'input window, operand 1, single buffered']
    #allocation4 [shape = 's32[1]{0}', space=sflag, size = 0x4, scoped, tag = 'scoped memory for quantized_cnn_forward.1']
    %9 = vsyncpa [#allocation4], 0
    // Predicated region
    $region2: #{quantized_cnn_forward.1} parent=1 // pred_check
      _
    $region3: #{quantized_cnn_forward.1} parent=1 // pred_check_branch
      %11 = sbr.rel (0) target = $region5
    $region4: #{quantized_cnn_forward.1} parent=1 // pred_region
      _
    $region5: #{quantized_cnn_forward.1} parent=1 // pred_fallthru
      _
    // Predicated region
    $region6: #{quantized_cnn_forward.1} parent=1 // pred_check
      _
    $region7: #{quantized_cnn_forward.1} parent=1 // pred_check_branch
      %13 = sbr.rel (0) target = $region9
    $region8: #{quantized_cnn_forward.1} parent=1 // pred_region
      %s15 = ssub.s32 64, 64
      %16 = vsyncadd [#allocation4], %s15
      %s18 = sshll.u32 %s1, 4
      %s19 = int_to_ptr.vmem [resolvable:$true] %s18
      %21 = dma.vmem_to_smem %s19, 64, [#allocation3], [#allocation4]
    $region9: #{quantized_cnn_forward.1} parent=1 // pred_fallthru
      _
    // Predicated region
    $region10: #{quantized_cnn_forward.1} parent=1 // pred_check
      _
    $region11: #{quantized_cnn_forward.1} parent=1 // pred_check_branch
      %23 = sbr.rel (0) target = $region13
    $region12: #{quantized_cnn_forward.1} parent=1 // pred_region
      _
    $region13: #{quantized_cnn_forward.1} parent=1 // pred_fallthru
      _
    // Predicated region
    $region14: #{quantized_cnn_forward.1} parent=1 // pred_check
      _
    $region15: #{quantized_cnn_forward.1} parent=1 // pred_check_branch
      %25 = sbr.rel (0) target = $region17
    $region16: #{quantized_cnn_forward.1} parent=1 // pred_region
      _
    $region17: #{quantized_cnn_forward.1} parent=1 // pred_fallthru
      _
    // Predicated region
    $region18: #{quantized_cnn_forward.1} parent=1 // pred_check
      _
    $region19: #{quantized_cnn_forward.1} parent=1 // pred_check_branch
      %27 = sbr.rel (0) target = $region21
    $region20: #{quantized_cnn_forward.1} parent=1 // pred_region
      %28 = dma.done [#allocation4], 64
    $region21: #{quantized_cnn_forward.1} parent=1 // pred_fallthru
      _
    %29 = sfence
    %30 = vst [vmem:[#allocation2] sm:$0xff] 0.0
    %31 = vst [vmem:[#allocation2 + $0x8] sm:$0xff] 0.0
    %32 = vst [vmem:[#allocation2 + $0x10] sm:$0xff] 0.0
    %33 = vst [vmem:[#allocation2 + $0x18] sm:$0xff] 0.0
    %34 = vst [vmem:[#allocation2 + $0x20] sm:$0xff] 0.0
    %35 = vst [vmem:[#allocation2 + $0x28] sm:$0xff] 0.0
    %36 = vst [vmem:[#allocation2 + $0x30] sm:$0xff] 0.0
    %37 = vst [vmem:[#allocation2 + $0x38] sm:$0xff] 0.0
    %vm38 = vcmask 130048
    %39 = vst.msk [vmem:[#allocation2 + $0x40] sm:$0xff] %vm38, 0.0
    %v40 = vld [vmem:[%s0] sm:$0xff]
    %v41 = vld [vmem:[%s0 + $0x8] sm:$0xff]
    %v42 = vld [vmem:[%s0 + $0x10] sm:$0xff]
    %v43 = vld [vmem:[%s0 + $0x18] sm:$0xff]
    %v44 = vld [vmem:[%s0 + $0x20] sm:$0xff]
    %v45 = vld [vmem:[%s0 + $0x28] sm:$0xff]
    %v46 = vld [vmem:[%s0 + $0x30] sm:$0xff]
    %47 = vst [vmem:[#allocation2 + $0x8] sm:$0xff] %v40
    %48 = vst [vmem:[#allocation2 + $0x10] sm:$0xff] %v41
    %49 = vst [vmem:[#allocation2 + $0x18] sm:$0xff] %v42
    %50 = vst [vmem:[#allocation2 + $0x20] sm:$0xff] %v43
    %51 = vst [vmem:[#allocation2 + $0x28] sm:$0xff] %v44
    %52 = vst [vmem:[#allocation2 + $0x30] sm:$0xff] %v45
    %53 = vst.msk [vmem:[#allocation2 + $0x38] sm:$0xff] %vm38, %v46
    %s54 = sld [smem:[#allocation3]]
    %v55 = vld [vmem:[#allocation2] sm:$0xff]
    %v56 = vld [vmem:[#allocation2 + $0x8] sm:$0xff]
    %v57 = vld [vmem:[#allocation2 + $0x10] sm:$0xff]
    %v58 = vld [vmem:[#allocation2 + $0x18] sm:$0xff]
    %v59 = vld [vmem:[#allocation2 + $0x20] sm:$0xff]
    %v60 = vld [vmem:[#allocation2 + $0x28] sm:$0xff]
    %v61 = vld [vmem:[#allocation2 + $0x30] sm:$0xff]
    %v62 = vstv %s54
    %v63 = vmul.f32 %v62, %v55
    %v64 = vmul.f32 %v62, %v56
    %v65 = vmul.f32 %v62, %v57
    %v66 = vmul.f32 %v62, %v58
    %v67 = vmul.f32 %v62, %v59
    %v68 = vmul.f32 %v62, %v60
    %v69 = vmul.f32 %v62, %v61
    %v70 = vadd.f32 %v63, 0.0
    %v71 = vadd.f32 %v64, 0.0
    %v72 = vadd.f32 %v65, 0.0
    %v73 = vadd.f32 %v66, 0.0
    %v74 = vadd.f32 %v67, 0.0
    %v75 = vadd.f32 %v68, 0.0
    %v76 = vadd.f32 %v69, 0.0
    %s77 = sld [smem:[#allocation3 + $0x80]]
    %v78 = vld [vmem:[#allocation2] sm:$0xff]
    %v79 = vld [vmem:[#allocation2 + $0x8] sm:$0xff]
    %v80 = vld [vmem:[#allocation2 + $0x10] sm:$0xff]
    %v81 = vld [vmem:[#allocation2 + $0x18] sm:$0xff]
    %v82 = vld [vmem:[#allocation2 + $0x20] sm:$0xff]
    %v83 = vld [vmem:[#allocation2 + $0x28] sm:$0xff]
    %v84 = vld [vmem:[#allocation2 + $0x30] sm:$0xff]
    %v85 = vld [vmem:[#allocation2 + $0x38] sm:$0xff]
    %v86 = vstv %s77
    %v87 = vmul.f32 %v86, %v78
    %v88 = vmul.f32 %v86, %v79
    %v89 = vmul.f32 %v86, %v80
    %v90 = vmul.f32 %v86, %v81
    %v91 = vmul.f32 %v86, %v82
    %v92 = vmul.f32 %v86, %v83
    %v93 = vmul.f32 %v86, %v84
    %v94 = vmul.f32 %v86, %v85
    %103 = vrot.lane.b32.xlu0 %v87, 100
    %v104 = vpop.permute.xlu0 %103
    %105 = vrot.lane.b32.xlu0 %v88, 100
    %v106 = vpop.permute.xlu0 %105
    %107 = vrot.lane.b32.xlu0 %v89, 100
    %v108 = vpop.permute.xlu0 %107
    %109 = vrot.lane.b32.xlu0 %v90, 100
    %v110 = vpop.permute.xlu0 %109
    %111 = vrot.lane.b32.xlu0 %v91, 100
    %v112 = vpop.permute.xlu0 %111
    %113 = vrot.lane.b32.xlu0 %v92, 100
    %v114 = vpop.permute.xlu0 %113
    %115 = vrot.lane.b32.xlu0 %v93, 100
    %v116 = vpop.permute.xlu0 %115
    %117 = vrot.lane.b32.xlu0 %v94, 100
    %v118 = vpop.permute.xlu0 %117
    %vm119 = vcmask 818176
    %v120 = vsel %vm119, %v104, %v106
    %v121 = vsel %vm119, %v106, %v108
    %v122 = vsel %vm119, %v108, %v110
    %v123 = vsel %vm119, %v110, %v112
    %v124 = vsel %vm119, %v112, %v114
    %v125 = vsel %vm119, %v114, %v116
    %v126 = vsel %vm119, %v116, %v118
    %v134 = vadd.f32 %v70, %v120
    %v135 = vadd.f32 %v71, %v121
    %v136 = vadd.f32 %v72, %v122
    %v137 = vadd.f32 %v73, %v123
    %v138 = vadd.f32 %v74, %v124
    %v139 = vadd.f32 %v75, %v125
    %v140 = vadd.f32 %v76, %v126
    %s141 = sld [smem:[#allocation3 + $0x100]]
    %v142 = vstv %s141
    %v143 = vmul.f32 %v142, %v79
    %v144 = vmul.f32 %v142, %v80
    %v145 = vmul.f32 %v142, %v81
    %v146 = vmul.f32 %v142, %v82
    %v147 = vmul.f32 %v142, %v83
    %v148 = vmul.f32 %v142, %v84
    %v149 = vmul.f32 %v142, %v85
    %157 = vrot.lane.b32.xlu0 %v143, 72
    %v158 = vpop.permute.xlu0 %157
    %159 = vrot.lane.b32.xlu0 %v144, 72
    %v160 = vpop.permute.xlu0 %159
    %161 = vrot.lane.b32.xlu0 %v145, 72
    %v162 = vpop.permute.xlu0 %161
    %163 = vrot.lane.b32.xlu0 %v146, 72
    %v164 = vpop.permute.xlu0 %163
    %165 = vrot.lane.b32.xlu0 %v147, 72
    %v166 = vpop.permute.xlu0 %165
    %167 = vrot.lane.b32.xlu0 %v148, 72
    %v168 = vpop.permute.xlu0 %167
    %169 = vrot.lane.b32.xlu0 %v149, 72
    %v170 = vpop.permute.xlu0 %169
    %vm171 = vcmask 588800
    %v172 = vsel %vm171, %v158, %v160
    %v173 = vsel %vm171, %v160, %v162
    %v174 = vsel %vm171, %v162, %v164
    %v175 = vsel %vm171, %v164, %v166
    %v176 = vsel %vm171, %v166, %v168
    %v177 = vsel %vm171, %v168, %v170
    %v185 = vadd.f32 %v134, %v158
    %v186 = vadd.f32 %v135, %v172
    %v187 = vadd.f32 %v136, %v173
    %v188 = vadd.f32 %v137, %v174
    %v189 = vadd.f32 %v138, %v175
    %v190 = vadd.f32 %v139, %v176
    %v191 = vadd.f32 %v140, %v177
    %s192 = sld [smem:[#allocation3 + $0x1]]
    %v193 = vstv %s192
    %v194 = vmul.f32 %v193, %v55
    %v195 = vmul.f32 %v193, %v56
    %v196 = vmul.f32 %v193, %v57
    %v197 = vmul.f32 %v193, %v58
    %v198 = vmul.f32 %v193, %v59
    %v199 = vmul.f32 %v193, %v60
    %v200 = vmul.f32 %v193, %v61
    %v201 = vadd.f32 %v194, 0.0
    %v202 = vadd.f32 %v195, 0.0
    %v203 = vadd.f32 %v196, 0.0
    %v204 = vadd.f32 %v197, 0.0
    %v205 = vadd.f32 %v198, 0.0
    %v206 = vadd.f32 %v199, 0.0
    %v207 = vadd.f32 %v200, 0.0
    %s208 = sld [smem:[#allocation3 + $0x81]]
    %v209 = vstv %s208
    %v210 = vmul.f32 %v209, %v79
    %v211 = vmul.f32 %v209, %v80
    %v212 = vmul.f32 %v209, %v81
    %v213 = vmul.f32 %v209, %v82
    %v214 = vmul.f32 %v209, %v83
    %v215 = vmul.f32 %v209, %v84
    %v216 = vmul.f32 %v209, %v85
    %224 = vrot.lane.b32.xlu0 %v210, 100
    %v225 = vpop.permute.xlu0 %224
    %226 = vrot.lane.b32.xlu0 %v211, 100
    %v227 = vpop.permute.xlu0 %226
    %228 = vrot.lane.b32.xlu0 %v212, 100
    %v229 = vpop.permute.xlu0 %228
    %230 = vrot.lane.b32.xlu0 %v213, 100
    %v231 = vpop.permute.xlu0 %230
    %232 = vrot.lane.b32.xlu0 %v214, 100
    %v233 = vpop.permute.xlu0 %232
    %234 = vrot.lane.b32.xlu0 %v215, 100
    %v235 = vpop.permute.xlu0 %234
    %236 = vrot.lane.b32.xlu0 %v216, 100
    %v237 = vpop.permute.xlu0 %236
    %v238 = vsel %vm119, %v225, %v227
    %v239 = vsel %vm119, %v227, %v229
    %v240 = vsel %vm119, %v229, %v231
    %v241 = vsel %vm119, %v231, %v233
    %v242 = vsel %vm119, %v233, %v235
    %v243 = vsel %vm119, %v235, %v237
    %v251 = vadd.f32 %v201, %v225
    %v252 = vadd.f32 %v202, %v238
    %v253 = vadd.f32 %v203, %v239
    %v254 = vadd.f32 %v204, %v240
    %v255 = vadd.f32 %v205, %v241
    %v256 = vadd.f32 %v206, %v242
    %v257 = vadd.f32 %v207, %v243
    %s258 = sld [smem:[#allocation3 + $0x101]]
    %v259 = vstv %s258
    %v260 = vmul.f32 %v259, %v79
    %v261 = vmul.f32 %v259, %v80
    %v262 = vmul.f32 %v259, %v81
    %v263 = vmul.f32 %v259, %v82
    %v264 = vmul.f32 %v259, %v83
    %v265 = vmul.f32 %v259, %v84
    %v266 = vmul.f32 %v259, %v85
    %274 = vrot.lane.b32.xlu0 %v260, 72
    %v275 = vpop.permute.xlu0 %274
    %276 = vrot.lane.b32.xlu0 %v261, 72
    %v277 = vpop.permute.xlu0 %276
    %278 = vrot.lane.b32.xlu0 %v262, 72
    %v279 = vpop.permute.xlu0 %278
    %280 = vrot.lane.b32.xlu0 %v263, 72
    %v281 = vpop.permute.xlu0 %280
    %282 = vrot.lane.b32.xlu0 %v264, 72
    %v283 = vpop.permute.xlu0 %282
    %284 = vrot.lane.b32.xlu0 %v265, 72
    %v285 = vpop.permute.xlu0 %284
    %286 = vrot.lane.b32.xlu0 %v266, 72
    %v287 = vpop.permute.xlu0 %286
    %v288 = vsel %vm171, %v275, %v277
    %v289 = vsel %vm171, %v277, %v279
    %v290 = vsel %vm171, %v279, %v281
    %v291 = vsel %vm171, %v281, %v283
    %v292 = vsel %vm171, %v283, %v285
    %v293 = vsel %vm171, %v285, %v287
    %v301 = vadd.f32 %v251, %v275
    %v302 = vadd.f32 %v252, %v288
    %v303 = vadd.f32 %v253, %v289
    %v304 = vadd.f32 %v254, %v290
    %v305 = vadd.f32 %v255, %v291
    %v306 = vadd.f32 %v256, %v292
    %v307 = vadd.f32 %v257, %v293
    %s308 = sld [smem:[#allocation3 + $0x2]]
    %v309 = vstv %s308
    %v310 = vmul.f32 %v309, %v55
    %v311 = vmul.f32 %v309, %v56
    %v312 = vmul.f32 %v309, %v57
    %v313 = vmul.f32 %v309, %v58
    %v314 = vmul.f32 %v309, %v59
    %v315 = vmul.f32 %v309, %v60
    %v316 = vmul.f32 %v309, %v61
    %v317 = vadd.f32 %v310, 0.0
    %v318 = vadd.f32 %v311, 0.0
    %v319 = vadd.f32 %v312, 0.0
    %v320 = vadd.f32 %v313, 0.0
    %v321 = vadd.f32 %v314, 0.0
    %v322 = vadd.f32 %v315, 0.0
    %v323 = vadd.f32 %v316, 0.0
    %s324 = sld [smem:[#allocation3 + $0x82]]
    %v325 = vstv %s324
    %v326 = vmul.f32 %v325, %v79
    %v327 = vmul.f32 %v325, %v80
    %v328 = vmul.f32 %v325, %v81
    %v329 = vmul.f32 %v325, %v82
    %v330 = vmul.f32 %v325, %v83
    %v331 = vmul.f32 %v325, %v84
    %v332 = vmul.f32 %v325, %v85
    %340 = vrot.lane.b32.xlu0 %v326, 100
    %v341 = vpop.permute.xlu0 %340
    %342 = vrot.lane.b32.xlu0 %v327, 100
    %v343 = vpop.permute.xlu0 %342
    %344 = vrot.lane.b32.xlu0 %v328, 100
    %v345 = vpop.permute.xlu0 %344
    %346 = vrot.lane.b32.xlu0 %v329, 100
    %v347 = vpop.permute.xlu0 %346
    %348 = vrot.lane.b32.xlu0 %v330, 100
    %v349 = vpop.permute.xlu0 %348
    %350 = vrot.lane.b32.xlu0 %v331, 100
    %v351 = vpop.permute.xlu0 %350
    %352 = vrot.lane.b32.xlu0 %v332, 100
    %v353 = vpop.permute.xlu0 %352
    %v354 = vsel %vm119, %v341, %v343
    %v355 = vsel %vm119, %v343, %v345
    %v356 = vsel %vm119, %v345, %v347
    %v357 = vsel %vm119, %v347, %v349
    %v358 = vsel %vm119, %v349, %v351
    %v359 = vsel %vm119, %v351, %v353
    %v367 = vadd.f32 %v317, %v341
    %v368 = vadd.f32 %v318, %v354
    %v369 = vadd.f32 %v319, %v355
    %v370 = vadd.f32 %v320, %v356
    %v371 = vadd.f32 %v321, %v357
    %v372 = vadd.f32 %v322, %v358
    %v373 = vadd.f32 %v323, %v359
    %s374 = sld [smem:[#allocation3 + $0x102]]
    %v375 = vstv %s374
    %v376 = vmul.f32 %v375, %v79
    %v377 = vmul.f32 %v375, %v80
    %v378 = vmul.f32 %v375, %v81
    %v379 = vmul.f32 %v375, %v82
    %v380 = vmul.f32 %v375, %v83
    %v381 = vmul.f32 %v375, %v84
    %v382 = vmul.f32 %v375, %v85
    %390 = vrot.lane.b32.xlu0 %v376, 72
    %v391 = vpop.permute.xlu0 %390
    %392 = vrot.lane.b32.xlu0 %v377, 72
    %v393 = vpop.permute.xlu0 %392
    %394 = vrot.lane.b32.xlu0 %v378, 72
    %v395 = vpop.permute.xlu0 %394
    %396 = vrot.lane.b32.xlu0 %v379, 72
    %v397 = vpop.permute.xlu0 %396
    %398 = vrot.lane.b32.xlu0 %v380, 72
    %v399 = vpop.permute.xlu0 %398
    %400 = vrot.lane.b32.xlu0 %v381, 72
    %v401 = vpop.permute.xlu0 %400
    %402 = vrot.lane.b32.xlu0 %v382, 72
    %v403 = vpop.permute.xlu0 %402
    %v404 = vsel %vm171, %v391, %v393
    %v405 = vsel %vm171, %v393, %v395
    %v406 = vsel %vm171, %v395, %v397
    %v407 = vsel %vm171, %v397, %v399
    %v408 = vsel %vm171, %v399, %v401
    %v409 = vsel %vm171, %v401, %v403
    %v417 = vadd.f32 %v367, %v391
    %v418 = vadd.f32 %v368, %v404
    %v419 = vadd.f32 %v369, %v405
    %v420 = vadd.f32 %v370, %v406
    %v421 = vadd.f32 %v371, %v407
    %v422 = vadd.f32 %v372, %v408
    %v423 = vadd.f32 %v373, %v409
    %v424 = vld [vmem:[%s3] ss:$2 sm:$0x7f]
    %v426 = vlaneseq
    %v427 = vshrl.u32 %v426, 7
    %v428 = vsub.s32 0, %v427
    %v429 = vrot.slane %v424, %v428
    %v430 = vlaneseq
    %v431 = vshrl.u32 %v430, 7
    %v432 = vsub.s32 1, %v431
    %v433 = vrot.slane %v424, %v432
    %v434 = vlaneseq
    %v435 = vshrl.u32 %v434, 7
    %v436 = vsub.s32 2, %v435
    %v437 = vrot.slane %v424, %v436
    %v438 = vlaneseq
    %v439 = vshrl.u32 %v438, 7
    %v440 = vsub.s32 3, %v439
    %v441 = vrot.slane %v424, %v440
    %v442 = vlaneseq
    %v443 = vshrl.u32 %v442, 7
    %v444 = vsub.s32 4, %v443
    %v445 = vrot.slane %v424, %v444
    %v446 = vlaneseq
    %v447 = vshrl.u32 %v446, 7
    %v448 = vsub.s32 5, %v447
    %v449 = vrot.slane %v424, %v448
    %v450 = vlaneseq
    %v451 = vshrl.u32 %v450, 7
    %v452 = vsub.s32 6, %v451
    %v453 = vrot.slane %v424, %v452
    %454 = vrot.lane.b32.xlu0 %v429, 99
    %v455 = vpop.permute.xlu0 %454
    %456 = vrot.lane.b32.xlu0 %v433, 99
    %v457 = vpop.permute.xlu0 %456
    %458 = vrot.lane.b32.xlu0 %v437, 99
    %v459 = vpop.permute.xlu0 %458
    %460 = vrot.lane.b32.xlu0 %v441, 99
    %v461 = vpop.permute.xlu0 %460
    %462 = vrot.lane.b32.xlu0 %v445, 99
    %v463 = vpop.permute.xlu0 %462
    %464 = vrot.lane.b32.xlu0 %v449, 99
    %v465 = vpop.permute.xlu0 %464
    %466 = vrot.lane.b32.xlu0 %v453, 99
    %v467 = vpop.permute.xlu0 %466
    %vm468 = vcmask 809984
    %v469 = vsel %vm468, %v455, %v457
    %v470 = vsel %vm468, %v457, %v459
    %v471 = vsel %vm468, %v459, %v461
    %v472 = vsel %vm468, %v461, %v463
    %v473 = vsel %vm468, %v463, %v465
    %v474 = vsel %vm468, %v465, %v467
    %v482 = vmul.f32 %v185, %v455
    %v483 = vmul.f32 %v186, %v469
    %v484 = vmul.f32 %v187, %v470
    %v485 = vmul.f32 %v188, %v471
    %v486 = vmul.f32 %v189, %v472
    %v487 = vmul.f32 %v190, %v473
    %v488 = vmul.f32 %v191, %v474
    %496 = vrot.lane.b32.xlu0 %v301, 127
    %v497 = vpop.permute.xlu0 %496
    %498 = vrot.lane.b32.xlu0 %v302, 127
    %v499 = vpop.permute.xlu0 %498
    %500 = vrot.lane.b32.xlu0 %v303, 127
    %v501 = vpop.permute.xlu0 %500
    %502 = vrot.lane.b32.xlu0 %v304, 127
    %v503 = vpop.permute.xlu0 %502
    %504 = vrot.lane.b32.xlu0 %v305, 127
    %v505 = vpop.permute.xlu0 %504
    %506 = vrot.lane.b32.xlu0 %v306, 127
    %v507 = vpop.permute.xlu0 %506
    %508 = vrot.lane.b32.xlu0 %v307, 127
    %v509 = vpop.permute.xlu0 %508
    %vm510 = vcmask 1039360
    %v511 = vsel %vm510, %v497, %v499
    %v512 = vsel %vm510, %v499, %v501
    %v513 = vsel %vm510, %v501, %v503
    %v514 = vsel %vm510, %v503, %v505
    %v515 = vsel %vm510, %v505, %v507
    %v516 = vsel %vm510, %v507, %v509
    %v524 = vadd.f32 %v482, %v511
    %v525 = vadd.f32 %v483, %v512
    %v526 = vadd.f32 %v484, %v513
    %v527 = vadd.f32 %v485, %v514
    %v528 = vadd.f32 %v486, %v515
    %v529 = vadd.f32 %v487, %v516
    %v530 = vadd.f32 %v488, %v509
    %s531 = scalar_lea.vmem %s3, 1
    %v532 = vld [vmem:[%s531] ss:$2 sm:$0x7f]
    %v534 = vlaneseq
    %v535 = vshrl.u32 %v534, 7
    %v536 = vsub.s32 0, %v535
    %v537 = vrot.slane %v532, %v536
    %v538 = vlaneseq
    %v539 = vshrl.u32 %v538, 7
    %v540 = vsub.s32 1, %v539
    %v541 = vrot.slane %v532, %v540
    %v542 = vlaneseq
    %v543 = vshrl.u32 %v542, 7
    %v544 = vsub.s32 2, %v543
    %v545 = vrot.slane %v532, %v544
    %v546 = vlaneseq
    %v547 = vshrl.u32 %v546, 7
    %v548 = vsub.s32 3, %v547
    %v549 = vrot.slane %v532, %v548
    %v550 = vlaneseq
    %v551 = vshrl.u32 %v550, 7
    %v552 = vsub.s32 4, %v551
    %v553 = vrot.slane %v532, %v552
    %v554 = vlaneseq
    %v555 = vshrl.u32 %v554, 7
    %v556 = vsub.s32 5, %v555
    %v557 = vrot.slane %v532, %v556
    %v558 = vlaneseq
    %v559 = vshrl.u32 %v558, 7
    %v560 = vsub.s32 6, %v559
    %v561 = vrot.slane %v532, %v560
    %562 = vrot.lane.b32.xlu0 %v537, 101
    %v563 = vpop.permute.xlu0 %562
    %564 = vrot.lane.b32.xlu0 %v541, 101
    %v565 = vpop.permute.xlu0 %564
    %566 = vrot.lane.b32.xlu0 %v545, 101
    %v567 = vpop.permute.xlu0 %566
    %568 = vrot.lane.b32.xlu0 %v549, 101
    %v569 = vpop.permute.xlu0 %568
    %570 = vrot.lane.b32.xlu0 %v553, 101
    %v571 = vpop.permute.xlu0 %570
    %572 = vrot.lane.b32.xlu0 %v557, 101
    %v573 = vpop.permute.xlu0 %572
    %574 = vrot.lane.b32.xlu0 %v561, 101
    %v575 = vpop.permute.xlu0 %574
    %vm576 = vcmask 826368
    %v577 = vsel %vm576, %v563, %v565
    %v578 = vsel %vm576, %v565, %v567
    %v579 = vsel %vm576, %v567, %v569
    %v580 = vsel %vm576, %v569, %v571
    %v581 = vsel %vm576, %v571, %v573
    %v582 = vsel %vm576, %v573, %v575
    %v590 = vmul.f32 %v417, %v563
    %v591 = vmul.f32 %v418, %v577
    %v592 = vmul.f32 %v419, %v578
    %v593 = vmul.f32 %v420, %v579
    %v594 = vmul.f32 %v421, %v580
    %v595 = vmul.f32 %v422, %v581
    %v596 = vmul.f32 %v423, %v582
    %604 = vrot.lane.b32.xlu0 %v590, 126
    %v605 = vpop.permute.xlu0 %604
    %606 = vrot.lane.b32.xlu0 %v591, 126
    %v607 = vpop.permute.xlu0 %606
    %608 = vrot.lane.b32.xlu0 %v592, 126
    %v609 = vpop.permute.xlu0 %608
    %610 = vrot.lane.b32.xlu0 %v593, 126
    %v611 = vpop.permute.xlu0 %610
    %612 = vrot.lane.b32.xlu0 %v594, 126
    %v613 = vpop.permute.xlu0 %612
    %614 = vrot.lane.b32.xlu0 %v595, 126
    %v615 = vpop.permute.xlu0 %614
    %616 = vrot.lane.b32.xlu0 %v596, 126
    %v617 = vpop.permute.xlu0 %616
    %vm618 = vcmask 1031168
    %v619 = vsel %vm618, %v605, %v607
    %v620 = vsel %vm618, %v607, %v609
    %v621 = vsel %vm618, %v609, %v611
    %v622 = vsel %vm618, %v611, %v613
    %v623 = vsel %vm618, %v613, %v615
    %v624 = vsel %vm618, %v615, %v617
    %v632 = vadd.f32 %v524, %v619
    %v633 = vadd.f32 %v525, %v620
    %v634 = vadd.f32 %v526, %v621
    %v635 = vadd.f32 %v527, %v622
    %v636 = vadd.f32 %v528, %v623
    %v637 = vadd.f32 %v529, %v624
    %v638 = vadd.f32 %v530, %v617
    %v639 = vld [vmem:[%s2] sm:$0xff]
    %v640 = vld [vmem:[%s2 + $0x8] sm:$0xff]
    %v641 = vld [vmem:[%s2 + $0x10] sm:$0xff]
    %v642 = vld [vmem:[%s2 + $0x18] sm:$0xff]
    %v643 = vld [vmem:[%s2 + $0x20] sm:$0xff]
    %v644 = vld [vmem:[%s2 + $0x28] sm:$0xff]
    %v645 = vld [vmem:[%s2 + $0x30] sm:$0xff]
    %v646 = vld [vmem:[%s2 + $0x38] sm:$0xff]
    %v647 = vld [vmem:[%s2 + $0x40] sm:$0xff]
    %v648 = vld [vmem:[%s2 + $0x48] sm:$0xff]
    %v649 = vld [vmem:[%s2 + $0x50] sm:$0xff]
    %v650 = vld [vmem:[%s2 + $0x58] sm:$0xff]
    %v651 = vld [vmem:[%s2 + $0x60] sm:$0xff]
    %v652 = vld [vmem:[%s2 + $0x68] sm:$0xff]
    %v653 = vld [vmem:[%s2 + $0x70] sm:$0xff]
    %v654 = vld [vmem:[%s2 + $0x78] sm:$0xff]
    %v655 = vld [vmem:[%s2 + $0x80] sm:$0xff]
    %v656 = vld [vmem:[%s2 + $0x88] sm:$0xff]
    %v657 = vld [vmem:[%s2 + $0x90] sm:$0xff]
    %v658 = vld [vmem:[%s2 + $0x98] sm:$0xff]
    %v659 = vld [vmem:[%s2 + $0xa0] sm:$0xff]
    %v660 = vld [vmem:[%s2 + $0xa8] sm:$0xff]
    %v661 = vld [vmem:[%s2 + $0xb0] sm:$0xff]
    %v662 = vld [vmem:[%s2 + $0xb8] sm:$0xff]
    %v663 = vld [vmem:[%s2 + $0xc0] sm:$0xff]
    %v664 = vld [vmem:[%s2 + $0xc8] sm:$0xff]
    %v665 = vld [vmem:[%s2 + $0xd0] sm:$0xff]
    %v666 = vld [vmem:[%s2 + $0xd8] sm:$0xff]
    %v667 = vld [vmem:[%s2 + $0xe0] sm:$0xff]
    %v668 = vld [vmem:[%s2 + $0xe8] sm:$0xff]
    %v669 = vld [vmem:[%s2 + $0xf0] sm:$0xff]
    %v670 = vld [vmem:[%s2 + $0xf8] sm:$0xff]
    %v671 = vld [vmem:[%s2 + $0x100] sm:$0xff]
    %v672 = vld [vmem:[%s2 + $0x108] sm:$0xff]
    %v673 = vld [vmem:[%s2 + $0x110] sm:$0xff]
    %v674 = vld [vmem:[%s2 + $0x118] sm:$0xff]
    %v675 = vld [vmem:[%s2 + $0x120] sm:$0xff]
    %v676 = vld [vmem:[%s2 + $0x128] sm:$0xff]
    %v677 = vld [vmem:[%s2 + $0x130] sm:$0xff]
    %v678 = vld [vmem:[%s2 + $0x138] sm:$0xff]
    %v679 = vld [vmem:[%s2 + $0x140] sm:$0xff]
    %v680 = vld [vmem:[%s2 + $0x148] sm:$0xff]
    %v681 = vld [vmem:[%s2 + $0x150] sm:$0xff]
    %v682 = vld [vmem:[%s2 + $0x158] sm:$0xff]
    %v683 = vld [vmem:[%s2 + $0x160] sm:$0xff]
    %v684 = vld [vmem:[%s2 + $0x168] sm:$0xff]
    %v685 = vld [vmem:[%s2 + $0x170] sm:$0xff]
    %v686 = vld [vmem:[%s2 + $0x178] sm:$0xff]
    %v687 = vld [vmem:[%s2 + $0x180] sm:$0xff]
    %v688 = vld [vmem:[%s2 + $0x188] sm:$0xff]
    %v689 = vld [vmem:[%s2 + $0x190] sm:$0xff]
    %v690 = vld [vmem:[%s2 + $0x198] sm:$0xff]
    %v691 = vld [vmem:[%s2 + $0x1a0] sm:$0xff]
    %v692 = vld [vmem:[%s2 + $0x1a8] sm:$0xff]
    %v693 = vld [vmem:[%s2 + $0x1b0] sm:$0xff]
    %v694 = vld [vmem:[%s2 + $0x1b8] sm:$0xff]
    %v695 = vld [vmem:[%s2 + $0x1c0] sm:$0xff]
    %v696 = vld [vmem:[%s2 + $0x1c8] sm:$0xff]
    %v697 = vld [vmem:[%s2 + $0x1d0] sm:$0xff]
    %v698 = vld [vmem:[%s2 + $0x1d8] sm:$0xff]
    %v699 = vld [vmem:[%s2 + $0x1e0] sm:$0xff]
    %v700 = vld [vmem:[%s2 + $0x1e8] sm:$0xff]
    %v701 = vld [vmem:[%s2 + $0x1f0] sm:$0xff]
    %v702 = vld [vmem:[%s2 + $0x1f8] sm:$0xff]
    %v703 = vld [vmem:[%s2 + $0x200] sm:$0xff]
    %v704 = vld [vmem:[%s2 + $0x208] sm:$0xff]
    %v705 = vld [vmem:[%s2 + $0x210] sm:$0xff]
    %v706 = vld [vmem:[%s2 + $0x218] sm:$0xff]
    %v707 = vld [vmem:[%s2 + $0x220] sm:$0xff]
    %v708 = vld [vmem:[%s2 + $0x228] sm:$0xff]
    %v709 = vld [vmem:[%s2 + $0x230] sm:$0xff]
    %v710 = vld [vmem:[%s2 + $0x238] sm:$0xff]
    %v711 = vld [vmem:[%s2 + $0x240] sm:$0xff]
    %v712 = vld [vmem:[%s2 + $0x248] sm:$0xff]
    %v713 = vld [vmem:[%s2 + $0x250] sm:$0xff]
    %v714 = vld [vmem:[%s2 + $0x258] sm:$0xff]
    %v715 = vld [vmem:[%s2 + $0x260] sm:$0xff]
    %v716 = vld [vmem:[%s2 + $0x268] sm:$0xff]
    %v717 = vld [vmem:[%s2 + $0x270] sm:$0xff]
    %v718 = vld [vmem:[%s2 + $0x278] sm:$0xff]
    %v719 = vld [vmem:[%s2 + $0x280] sm:$0xff]
    %v720 = vld [vmem:[%s2 + $0x288] sm:$0xff]
    %v721 = vld [vmem:[%s2 + $0x290] sm:$0xff]
    %v722 = vld [vmem:[%s2 + $0x298] sm:$0xff]
    %v723 = vld [vmem:[%s2 + $0x2a0] sm:$0xff]
    %v724 = vld [vmem:[%s2 + $0x2a8] sm:$0xff]
    %v725 = vld [vmem:[%s2 + $0x2b0] sm:$0xff]
    %v726 = vld [vmem:[%s2 + $0x2b8] sm:$0xff]
    %v727 = vld [vmem:[%s2 + $0x2c0] sm:$0xff]
    %v728 = vld [vmem:[%s2 + $0x2c8] sm:$0xff]
    %v729 = vld [vmem:[%s2 + $0x2d0] sm:$0xff]
    %v730 = vld [vmem:[%s2 + $0x2d8] sm:$0xff]
    %v731 = vld [vmem:[%s2 + $0x2e0] sm:$0xff]
    %v732 = vld [vmem:[%s2 + $0x2e8] sm:$0xff]
    %v733 = vld [vmem:[%s2 + $0x2f0] sm:$0xff]
    %v734 = vld [vmem:[%s2 + $0x2f8] sm:$0xff]
    %v735 = vld [vmem:[%s2 + $0x300] sm:$0xff]
    %v736 = vld [vmem:[%s2 + $0x308] sm:$0xff]
    %v737 = vld [vmem:[%s2 + $0x310] sm:$0xff]
    %v738 = vld [vmem:[%s2 + $0x318] sm:$0xff]
    %v739 = vld [vmem:[%s2 + $0x320] sm:$0xff]
    %v740 = vld [vmem:[%s2 + $0x328] sm:$0xff]
    %v741 = vld [vmem:[%s2 + $0x330] sm:$0xff]
    %v742 = vld [vmem:[%s2 + $0x338] sm:$0xff]
    %v743 = vld [vmem:[%s2 + $0x340] sm:$0xff]
    %v744 = vld [vmem:[%s2 + $0x348] sm:$0xff]
    %v745 = vld [vmem:[%s2 + $0x350] sm:$0xff]
    %v746 = vld [vmem:[%s2 + $0x358] sm:$0xff]
    %v747 = vld [vmem:[%s2 + $0x360] sm:$0xff]
    %v748 = vld [vmem:[%s2 + $0x368] sm:$0xff]
    %v749 = vld [vmem:[%s2 + $0x370] sm:$0xff]
    %v750 = vld [vmem:[%s2 + $0x378] sm:$0xff]
    %758 = vrot.lane.b32.xlu0 %v632, 29
    %v759 = vpop.permute.xlu0 %758
    %760 = vrot.lane.b32.xlu0 %v633, 29
    %v761 = vpop.permute.xlu0 %760
    %762 = vrot.lane.b32.xlu0 %v634, 29
    %v763 = vpop.permute.xlu0 %762
    %764 = vrot.lane.b32.xlu0 %v635, 29
    %v765 = vpop.permute.xlu0 %764
    %766 = vrot.lane.b32.xlu0 %v636, 29
    %v767 = vpop.permute.xlu0 %766
    %768 = vrot.lane.b32.xlu0 %v637, 29
    %v769 = vpop.permute.xlu0 %768
    %770 = vrot.lane.b32.xlu0 %v638, 29
    %v771 = vpop.permute.xlu0 %770
    %vm772 = vcmask 236544
    %v773 = vsel %vm772, %v759, %v761
    %v774 = vsel %vm772, %v761, %v763
    %v775 = vsel %vm772, %v763, %v765
    %v776 = vsel %vm772, %v765, %v767
    %v777 = vsel %vm772, %v767, %v769
    %v778 = vsel %vm772, %v769, %v771
    %v785 = vsel %vm38, %v771, 0
    %v788 = vsel %vm38, %v645, 0
    %v791 = vsel %vm38, %v652, 0
    %v794 = vsel %vm38, %v659, 0
    %v797 = vsel %vm38, %v666, 0
    %v800 = vsel %vm38, %v673, 0
    %v803 = vsel %vm38, %v680, 0
    %v806 = vsel %vm38, %v687, 0
    %v809 = vsel %vm38, %v694, 0
    %v812 = vsel %vm38, %v701, 0
    %v815 = vsel %vm38, %v708, 0
    %v818 = vsel %vm38, %v715, 0
    %v821 = vsel %vm38, %v722, 0
    %v824 = vsel %vm38, %v729, 0
    %v827 = vsel %vm38, %v736, 0
    %v830 = vsel %vm38, %v743, 0
    %v833 = vsel %vm38, %v750, 0
    %835 = vmatprep.subr.mxu0 %v745
    %836 = vmatpush1.xpose.msra.mxu0 %v744
    %837 = vmatprep.subr.mxu0 %v738
    %838 = vmatpush1.xpose.msra.mxu0 %v737
    %839 = vmatprep.subr.mxu0 %v731
    %840 = vmatpush1.xpose.msra.mxu0 %v730
    %841 = vmatprep.subr.mxu0 %v724
    %842 = vmatpush1.xpose.msra.mxu0 %v723
    %843 = vmatprep.subr.mxu0 %v717
    %844 = vmatpush1.xpose.msra.mxu0 %v716
    %845 = vmatprep.subr.mxu0 %v710
    %846 = vmatpush1.xpose.msra.mxu0 %v709
    %847 = vmatprep.subr.mxu0 %v703
    %848 = vmatpush1.xpose.msra.mxu0 %v702
    %849 = vmatprep.subr.mxu0 %v696
    %850 = vmatpush1.xpose.msra.mxu0 %v695
    %851 = vmatprep.subr.mxu0 %v689
    %852 = vmatpush1.xpose.msra.mxu0 %v688
    %853 = vmatprep.subr.mxu0 %v682
    %854 = vmatpush1.xpose.msra.mxu0 %v681
    %855 = vmatprep.subr.mxu0 %v675
    %856 = vmatpush1.xpose.msra.mxu0 %v674
    %857 = vmatprep.subr.mxu0 %v668
    %858 = vmatpush1.xpose.msra.mxu0 %v667
    %859 = vmatprep.subr.mxu0 %v661
    %860 = vmatpush1.xpose.msra.mxu0 %v660
    %861 = vmatprep.subr.mxu0 %v654
    %862 = vmatpush1.xpose.msra.mxu0 %v653
    %863 = vmatprep.subr.mxu0 %v647
    %864 = vmatpush1.xpose.msra.mxu0 %v646
    %865 = vmatprep.subr.mxu0 %v640
    %866 = vmatpush1.xpose.msra.mxu0 %v639
    %867 = vmatprep.subr.mxu0 0.0
    %868 = vmatpush2.xpose.msra.mxu0 0.0
    %869 = vmatprep.subr.mxu0 0.0
    %870 = vmatpush2.xpose.msra.mxu0 0.0
    %871 = vmatprep.subr.mxu0 0.0
    %872 = vmatpush2.xpose.msra.mxu0 0.0
    %873 = vmatprep.subr.mxu0 0.0
    %874 = vmatpush2.xpose.msra.mxu0 0.0
    %875 = vmatprep.subr.mxu0 0.0
    %876 = vmatpush2.xpose.msra.mxu0 0.0
    %877 = vmatprep.subr.mxu0 0.0
    %878 = vmatpush2.xpose.msra.mxu0 0.0
    %879 = vmatprep.subr.mxu0 0.0
    %880 = vmatpush2.xpose.msra.mxu0 0.0
    %881 = vmatprep.subr.mxu0 0.0
    %882 = vmatpush2.xpose.msra.mxu0 0.0
    %883 = vmatprep.subr.mxu0 0.0
    %884 = vmatpush2.xpose.msra.mxu0 0.0
    %885 = vmatprep.subr.mxu0 0.0
    %886 = vmatpush2.xpose.msra.mxu0 0.0
    %887 = vmatprep.subr.mxu0 0.0
    %888 = vmatpush2.xpose.msra.mxu0 0.0
    %889 = vmatprep.subr.mxu0 0.0
    %890 = vmatpush2.xpose.msra.mxu0 0.0
    %891 = vmatprep.subr.mxu0 0.0
    %892 = vmatpush2.xpose.msra.mxu0 0.0
    %893 = vmatprep.subr.mxu0 0.0
    %894 = vmatpush2.xpose.msra.mxu0 0.0
    %895 = vmatprep.subr.mxu0 0.0
    %896 = vmatpush2.xpose.msra.mxu0 0.0
    %897 = vmatprep.subr.mxu0 0.0
    %898 = vmatpush2.xpose.msra.mxu0 0.0
    %899 = vmatprep.mubr.f32.mxu0 %v774
    %900 = vmatmul.mubr.f32.gmra.mxu0 %v773
    %v901 = vpop.f32.mrf.mxu0
    %v902 = vadd.f32 0.0, %v901
    %v903 = vpop.f32.mrf.mxu0
    %904 = vdwg.mxu0
    %905 = vmatprep.subr.mxu0 %v747
    %906 = vmatpush1.xpose.msra.mxu0 %v746
    %907 = vmatprep.subr.mxu0 %v740
    %908 = vmatpush1.xpose.msra.mxu0 %v739
    %909 = vmatprep.subr.mxu0 %v733
    %910 = vmatpush1.xpose.msra.mxu0 %v732
    %911 = vmatprep.subr.mxu0 %v726
    %912 = vmatpush1.xpose.msra.mxu0 %v725
    %913 = vmatprep.subr.mxu0 %v719
    %914 = vmatpush1.xpose.msra.mxu0 %v718
    %915 = vmatprep.subr.mxu0 %v712
    %916 = vmatpush1.xpose.msra.mxu0 %v711
    %917 = vmatprep.subr.mxu0 %v705
    %918 = vmatpush1.xpose.msra.mxu0 %v704
    %919 = vmatprep.subr.mxu0 %v698
    %920 = vmatpush1.xpose.msra.mxu0 %v697
    %921 = vmatprep.subr.mxu0 %v691
    %922 = vmatpush1.xpose.msra.mxu0 %v690
    %923 = vmatprep.subr.mxu0 %v684
    %924 = vmatpush1.xpose.msra.mxu0 %v683
    %925 = vmatprep.subr.mxu0 %v677
    %926 = vmatpush1.xpose.msra.mxu0 %v676
    %927 = vmatprep.subr.mxu0 %v670
    %928 = vmatpush1.xpose.msra.mxu0 %v669
    %929 = vmatprep.subr.mxu0 %v663
    %930 = vmatpush1.xpose.msra.mxu0 %v662
    %931 = vmatprep.subr.mxu0 %v656
    %932 = vmatpush1.xpose.msra.mxu0 %v655
    %933 = vmatprep.subr.mxu0 %v649
    %934 = vmatpush1.xpose.msra.mxu0 %v648
    %935 = vmatprep.subr.mxu0 %v642
    %936 = vmatpush1.xpose.msra.mxu0 %v641
    %937 = vmatprep.subr.mxu0 0.0
    %938 = vmatpush2.xpose.msra.mxu0 0.0
    %939 = vmatprep.subr.mxu0 0.0
    %940 = vmatpush2.xpose.msra.mxu0 0.0
    %941 = vmatprep.subr.mxu0 0.0
    %942 = vmatpush2.xpose.msra.mxu0 0.0
    %943 = vmatprep.subr.mxu0 0.0
    %944 = vmatpush2.xpose.msra.mxu0 0.0
    %945 = vmatprep.subr.mxu0 0.0
    %946 = vmatpush2.xpose.msra.mxu0 0.0
    %947 = vmatprep.subr.mxu0 0.0
    %948 = vmatpush2.xpose.msra.mxu0 0.0
    %949 = vmatprep.subr.mxu0 0.0
    %950 = vmatpush2.xpose.msra.mxu0 0.0
    %951 = vmatprep.subr.mxu0 0.0
    %952 = vmatpush2.xpose.msra.mxu0 0.0
    %953 = vmatprep.subr.mxu0 0.0
    %954 = vmatpush2.xpose.msra.mxu0 0.0
    %955 = vmatprep.subr.mxu0 0.0
    %956 = vmatpush2.xpose.msra.mxu0 0.0
    %957 = vmatprep.subr.mxu0 0.0
    %958 = vmatpush2.xpose.msra.mxu0 0.0
    %959 = vmatprep.subr.mxu0 0.0
    %960 = vmatpush2.xpose.msra.mxu0 0.0
    %961 = vmatprep.subr.mxu0 0.0
    %962 = vmatpush2.xpose.msra.mxu0 0.0
    %963 = vmatprep.subr.mxu0 0.0
    %964 = vmatpush2.xpose.msra.mxu0 0.0
    %965 = vmatprep.subr.mxu0 0.0
    %966 = vmatpush2.xpose.msra.mxu0 0.0
    %967 = vmatprep.subr.mxu0 0.0
    %968 = vmatpush2.xpose.msra.mxu0 0.0
    %969 = vmatprep.mubr.f32.mxu0 %v776
    %970 = vmatmul.mubr.f32.gmra.mxu0 %v775
    %v971 = vpop.f32.mrf.mxu0
    %v972 = vadd.f32 %v902, %v971
    %v973 = vpop.f32.mrf.mxu0
    %974 = vdwg.mxu0
    %975 = vmatprep.subr.mxu0 %v749
    %976 = vmatpush1.xpose.msra.mxu0 %v748
    %977 = vmatprep.subr.mxu0 %v742
    %978 = vmatpush1.xpose.msra.mxu0 %v741
    %979 = vmatprep.subr.mxu0 %v735
    %980 = vmatpush1.xpose.msra.mxu0 %v734
    %981 = vmatprep.subr.mxu0 %v728
    %982 = vmatpush1.xpose.msra.mxu0 %v727
    %983 = vmatprep.subr.mxu0 %v721
    %984 = vmatpush1.xpose.msra.mxu0 %v720
    %985 = vmatprep.subr.mxu0 %v714
    %986 = vmatpush1.xpose.msra.mxu0 %v713
    %987 = vmatprep.subr.mxu0 %v707
    %988 = vmatpush1.xpose.msra.mxu0 %v706
    %989 = vmatprep.subr.mxu0 %v700
    %990 = vmatpush1.xpose.msra.mxu0 %v699
    %991 = vmatprep.subr.mxu0 %v693
    %992 = vmatpush1.xpose.msra.mxu0 %v692
    %993 = vmatprep.subr.mxu0 %v686
    %994 = vmatpush1.xpose.msra.mxu0 %v685
    %995 = vmatprep.subr.mxu0 %v679
    %996 = vmatpush1.xpose.msra.mxu0 %v678
    %997 = vmatprep.subr.mxu0 %v672
    %998 = vmatpush1.xpose.msra.mxu0 %v671
    %999 = vmatprep.subr.mxu0 %v665
    %1000 = vmatpush1.xpose.msra.mxu0 %v664
    %1001 = vmatprep.subr.mxu0 %v658
    %1002 = vmatpush1.xpose.msra.mxu0 %v657
    %1003 = vmatprep.subr.mxu0 %v651
    %1004 = vmatpush1.xpose.msra.mxu0 %v650
    %1005 = vmatprep.subr.mxu0 %v644
    %1006 = vmatpush1.xpose.msra.mxu0 %v643
    %1007 = vmatprep.subr.mxu0 0.0
    %1008 = vmatpush2.xpose.msra.mxu0 0.0
    %1009 = vmatprep.subr.mxu0 0.0
    %1010 = vmatpush2.xpose.msra.mxu0 0.0
    %1011 = vmatprep.subr.mxu0 0.0
    %1012 = vmatpush2.xpose.msra.mxu0 0.0
    %1013 = vmatprep.subr.mxu0 0.0
    %1014 = vmatpush2.xpose.msra.mxu0 0.0
    %1015 = vmatprep.subr.mxu0 0.0
    %1016 = vmatpush2.xpose.msra.mxu0 0.0
    %1017 = vmatprep.subr.mxu0 0.0
    %1018 = vmatpush2.xpose.msra.mxu0 0.0
    %1019 = vmatprep.subr.mxu0 0.0
    %1020 = vmatpush2.xpose.msra.mxu0 0.0
    %1021 = vmatprep.subr.mxu0 0.0
    %1022 = vmatpush2.xpose.msra.mxu0 0.0
    %1023 = vmatprep.subr.mxu0 0.0
    %1024 = vmatpush2.xpose.msra.mxu0 0.0
    %1025 = vmatprep.subr.mxu0 0.0
    %1026 = vmatpush2.xpose.msra.mxu0 0.0
    %1027 = vmatprep.subr.mxu0 0.0
    %1028 = vmatpush2.xpose.msra.mxu0 0.0
    %1029 = vmatprep.subr.mxu0 0.0
    %1030 = vmatpush2.xpose.msra.mxu0 0.0
    %1031 = vmatprep.subr.mxu0 0.0
    %1032 = vmatpush2.xpose.msra.mxu0 0.0
    %1033 = vmatprep.subr.mxu0 0.0
    %1034 = vmatpush2.xpose.msra.mxu0 0.0
    %1035 = vmatprep.subr.mxu0 0.0
    %1036 = vmatpush2.xpose.msra.mxu0 0.0
    %1037 = vmatprep.subr.mxu0 0.0
    %1038 = vmatpush2.xpose.msra.mxu0 0.0
    %1039 = vmatprep.mubr.f32.mxu0 %v778
    %1040 = vmatmul.mubr.f32.gmra.mxu0 %v777
    %v1041 = vpop.f32.mrf.mxu0
    %v1042 = vadd.f32 %v972, %v1041
    %v1043 = vpop.f32.mrf.mxu0
    %1044 = vdwg.mxu0
    %1045 = vmatprep.subr.mxu0 0.0
    %1046 = vmatpush1.xpose.msra.mxu0 %v833
    %1047 = vmatprep.subr.mxu0 0.0
    %1048 = vmatpush1.xpose.msra.mxu0 %v830
    %1049 = vmatprep.subr.mxu0 0.0
    %1050 = vmatpush1.xpose.msra.mxu0 %v827
    %1051 = vmatprep.subr.mxu0 0.0
    %1052 = vmatpush1.xpose.msra.mxu0 %v824
    %1053 = vmatprep.subr.mxu0 0.0
    %1054 = vmatpush1.xpose.msra.mxu0 %v821
    %1055 = vmatprep.subr.mxu0 0.0
    %1056 = vmatpush1.xpose.msra.mxu0 %v818
    %1057 = vmatprep.subr.mxu0 0.0
    %1058 = vmatpush1.xpose.msra.mxu0 %v815
    %1059 = vmatprep.subr.mxu0 0.0
    %1060 = vmatpush1.xpose.msra.mxu0 %v812
    %1061 = vmatprep.subr.mxu0 0.0
    %1062 = vmatpush1.xpose.msra.mxu0 %v809
    %1063 = vmatprep.subr.mxu0 0.0
    %1064 = vmatpush1.xpose.msra.mxu0 %v806
    %1065 = vmatprep.subr.mxu0 0.0
    %1066 = vmatpush1.xpose.msra.mxu0 %v803
    %1067 = vmatprep.subr.mxu0 0.0
    %1068 = vmatpush1.xpose.msra.mxu0 %v800
    %1069 = vmatprep.subr.mxu0 0.0
    %1070 = vmatpush1.xpose.msra.mxu0 %v797
    %1071 = vmatprep.subr.mxu0 0.0
    %1072 = vmatpush1.xpose.msra.mxu0 %v794
    %1073 = vmatprep.subr.mxu0 0.0
    %1074 = vmatpush1.xpose.msra.mxu0 %v791
    %1075 = vmatprep.subr.mxu0 0.0
    %1076 = vmatpush1.xpose.msra.mxu0 %v788
    %1077 = vmatprep.subr.mxu0 0.0
    %1078 = vmatpush2.xpose.msra.mxu0 0.0
    %1079 = vmatprep.subr.mxu0 0.0
    %1080 = vmatpush2.xpose.msra.mxu0 0.0
    %1081 = vmatprep.subr.mxu0 0.0
    %1082 = vmatpush2.xpose.msra.mxu0 0.0
    %1083 = vmatprep.subr.mxu0 0.0
    %1084 = vmatpush2.xpose.msra.mxu0 0.0
    %1085 = vmatprep.subr.mxu0 0.0
    %1086 = vmatpush2.xpose.msra.mxu0 0.0
    %1087 = vmatprep.subr.mxu0 0.0
    %1088 = vmatpush2.xpose.msra.mxu0 0.0
    %1089 = vmatprep.subr.mxu0 0.0
    %1090 = vmatpush2.xpose.msra.mxu0 0.0
    %1091 = vmatprep.subr.mxu0 0.0
    %1092 = vmatpush2.xpose.msra.mxu0 0.0
    %1093 = vmatprep.subr.mxu0 0.0
    %1094 = vmatpush2.xpose.msra.mxu0 0.0
    %1095 = vmatprep.subr.mxu0 0.0
    %1096 = vmatpush2.xpose.msra.mxu0 0.0
    %1097 = vmatprep.subr.mxu0 0.0
    %1098 = vmatpush2.xpose.msra.mxu0 0.0
    %1099 = vmatprep.subr.mxu0 0.0
    %1100 = vmatpush2.xpose.msra.mxu0 0.0
    %1101 = vmatprep.subr.mxu0 0.0
    %1102 = vmatpush2.xpose.msra.mxu0 0.0
    %1103 = vmatprep.subr.mxu0 0.0
    %1104 = vmatpush2.xpose.msra.mxu0 0.0
    %1105 = vmatprep.subr.mxu0 0.0
    %1106 = vmatpush2.xpose.msra.mxu0 0.0
    %1107 = vmatprep.subr.mxu0 0.0
    %1108 = vmatpush2.xpose.msra.mxu0 0.0
    %1109 = vmatprep.mubr.f32.mxu0 0.0
    %1110 = vmatmul.mubr.f32.gmra.mxu0 %v785
    %v1111 = vpop.f32.mrf.mxu0
    %v1112 = vadd.f32 %v1042, %v1111
    %v1113 = vpop.f32.mrf.mxu0
    %1114 = vdwg.mxu0
    %1115 = vst [vmem:[%s4] sm:$0xff] %v1112
    // Predicated region
    $region22: #{quantized_cnn_forward.1} parent=1 // pred_check
      _
    $region23: #{quantized_cnn_forward.1} parent=1 // pred_check_branch
      %1117 = sbr.rel (0) target = $region25
    $region24: #{quantized_cnn_forward.1} parent=1 // pred_region
      _
    $region25: #{quantized_cnn_forward.1} parent=1 // pred_fallthru
      _
    // Predicated region
    $region26: #{quantized_cnn_forward.1} parent=1 // pred_check
      _
    $region27: #{quantized_cnn_forward.1} parent=1 // pred_check_branch
      %1119 = sbr.rel (0) target = $region29
    $region28: #{quantized_cnn_forward.1} parent=1 // pred_region
      _
    $region29: #{quantized_cnn_forward.1} parent=1 // pred_fallthru
      _
    %1120 = vsyncpa [#allocation4], 1

</llo_original>
